<compile_context>
chip_gen: v7x
topology: tpu7x:2x2x1
jax: 0.10.0
libtpu: 0.0.40
codegen_flags: <defaults>
</compile_context>

<pallas_src>
import functools
import math

import numpy as np
import jax
import jax.numpy as jnp
from jax.experimental import pallas as pl
from jax.experimental.pallas import tpu as pltpu


def _cdiv(a, b):
    return -(-a // b)


def _round_up(a, b):
    return _cdiv(a, b) * b


# ----------------------------------------------------------------------------
# Parameter init (mirrors SincConv._init_sinc_conv, deterministic)
# ----------------------------------------------------------------------------
def _to_mel(hz):
    return 2595 * np.log10(1 + hz / 700)


def _to_hz(mel):
    return 700 * (10 ** (mel / 2595) - 1)


def init_sinc_params(out_channels, in_channels, kernel_size,
                     sample_rate, min_low_hz, min_band_hz):
    high_hz = sample_rate / 2 - (min_low_hz + min_band_hz)
    mel = np.linspace(_to_mel(min_low_hz), _to_mel(high_hz),
                      out_channels + 1).astype(np.float32)
    hz = _to_hz(mel).astype(np.float32)

    low_hz_ = jnp.asarray(hz[:-1][:, None], jnp.float32)               # (O, 1)
    band_hz_ = jnp.asarray((hz[1:] - hz[:-1])[:, None], jnp.float32)   # (O, 1)
    offset = jnp.zeros((out_channels, in_channels), jnp.float32)       # (O, C)

    n_lin = np.linspace(0.0, kernel_size / 2 - 1,
                        int(kernel_size / 2)).astype(np.float32)
    window_ = jnp.asarray(0.54 - 0.46 * np.cos(2 * math.pi * n_lin / kernel_size),
                          jnp.float32)                                 # (k//2,)
    n = (kernel_size - 1) / 2.0
    n_ = jnp.asarray(2 * math.pi * np.arange(-n, 0.0, dtype=np.float32)[None, :]
                     / sample_rate, jnp.float32)                       # (1, k//2)
    return low_hz_, band_hz_, offset, window_, n_


# ----------------------------------------------------------------------------
# Sinc filter construction (mirrors SincConv._get_sinc_filters), vectorized
# ----------------------------------------------------------------------------
def get_sinc_filters(low_hz_, band_hz_, offset, window_, n_,
                     out_channels, kernel_size, sample_rate,
                     min_low_hz, min_band_hz):
    low = min_low_hz + jnp.abs(low_hz_)                                # (O, 1)
    high = jnp.clip(low + min_band_hz + jnp.abs(band_hz_),
                    min_low_hz, sample_rate / 2)                       # (O, 1)
    band = (high - low)[:, 0]                                          # (O,)

    f_times_t_low = low @ n_                                           # (O, k//2)
    f_times_t_high = high @ n_                                         # (O, k//2)

    band_pass_left = ((jnp.sin(f_times_t_high) - jnp.sin(f_times_t_low))
                      / (n_ / 2)) * window_
    band_pass_center = 2 * band[:, None]
    band_pass_right = jnp.flip(band_pass_left, axis=1)
    band_pass = jnp.concatenate(
        [band_pass_left, band_pass_center, band_pass_right], axis=1)   # (O, k)
    band_pass = band_pass / (2 * band[:, None])

    # Offset -> integer placement of the k-tap filter inside a 2k-tap bigfilter.
    # Matches torch exactly: rounding = floor(off) + sigmoid(100*frac), then the
    # int() truncation.  Note: sigmoid saturates to 1.0f for frac >~ 0.17, so the
    # placement is floor(off)+1 in that regime -- this is the torch behaviour,
    # NOT a plain truncation of `off`.
    off = jax.nn.sigmoid(offset) * kernel_size                         # (O, C)
    rounding = jnp.floor(off) + jax.nn.sigmoid(100.0 * jnp.remainder(off, 1.0))
    r = rounding[:, :2].astype(jnp.int32)                              # (O, 2)

    pos = jnp.arange(2 * kernel_size, dtype=jnp.int32)                 # (2k,)
    rel = pos[None, None, :] - r[:, :, None]                           # (O, 2, 2k)
    valid = (rel >= 0) & (rel < kernel_size)
    rel_c = jnp.clip(rel, 0, kernel_size - 1)
    gathered = jnp.take_along_axis(
        jnp.broadcast_to(band_pass[:, None, :],
                         (out_channels, 2, kernel_size)), rel_c, axis=2)
    bigfilter = jnp.where(valid, gathered, 0.0)                        # (O, 2, 2k)
    # TODO(synk): the 2k-tap bigfilter is just the k-tap band_pass at an integer
    # offset; folding the offset into the slab/output indexing would halve the
    # im2col rows and the MXU contraction K (only worth it if slab build still
    # dominates after the grouped-store rewrite).
    return bigfilter


# ----------------------------------------------------------------------------
# get_padding_elem (SpeechBrain helper used by _manage_padding)
# ----------------------------------------------------------------------------
def get_padding_elem(L_in, stride, kernel_size, dilation):
    if stride > 1:
        return [kernel_size // 2, kernel_size // 2]
    L_out = math.floor((L_in - dilation * (kernel_size - 1) - 1) / stride) + 1
    p = math.floor((L_in - L_out) / 2)
    return [p, p]


# ----------------------------------------------------------------------------
# Pallas conv1d kernel: time-tiled, grouped im2col + single fused MXU matmul
# ----------------------------------------------------------------------------
_GROUP_ROWS = 16   # one bf16 sublane tile: each group store is a full, aligned vst


def _build_slab(win, slab_ref, *, n_groups, taps_per_group, c, dilation, tile_l):
    """im2col: slab[j*C + ch, l] = win[ch, l + j*dilation], built per 16-row group.

    `win` is an in-register (C, WIN) bf16 value; per-tap shifted views are static
    lane slices of registers (XLU shifts, no per-tap VMEM reloads), and each
    group issues ONE aligned, unmasked 16-sublane store instead of
    `taps_per_group` masked 2-sublane stores.
    """
    for g in range(n_groups):                       # static unroll (n_groups <~ 64)
        parts = []
        for j in range(taps_per_group):
            start = (g * taps_per_group + j) * dilation          # static offset
            parts.append(win[:, start:start + tile_l])           # (C, tile_l)
        blk = jnp.concatenate(parts, axis=0)                     # (16, tile_l)
        slab_ref[g * _GROUP_ROWS:(g + 1) * _GROUP_ROWS, :] = blk


def _sinc_conv1d_kernel(x_hbm, w_ref, o_ref, win_buf, slab_ref, dma_sem, *,
                        n_groups, taps_per_group, c, dilation, tile_l, win_len,
                        n_inner):
    b = pl.program_id(0)       # batch            ("parallel")
    to = pl.program_id(1)      # outer time block ("parallel": feeds 2nd TC on v7x)
    ti = pl.program_id(2)      # inner time tile  ("arbitrary": carries DMA state)

    def window_copy(inner_idx, slot):
        t = to * n_inner + inner_idx
        start = pl.multiple_of(t * tile_l, 128)
        return pltpu.make_async_copy(
            x_hbm.at[b, :, pl.ds(start, win_len)],
            win_buf.at[slot],
            dma_sem.at[slot])

    slot = ti % 2

    # Prime the double buffer at the start of every (batch, outer) block.  The
    # pipeline state only spans the inner axis, so this is safe when the two
    # leading "parallel" axes are split across TensorCores.
    @pl.when(ti == 0)
    def _():
        window_copy(0, 0).start()

    # Wait for this tile's window, then prefetch the next one within the block.
    window_copy(ti, slot).wait()

    @pl.when(ti + 1 < n_inner)
    def _():
        window_copy(ti + 1, 1 - slot).start()

    # Single compute path: the dynamic leading-axis slot index is just an
    # address offset; the whole window is pulled into vregs ONCE per tile.
    win = win_buf[slot]                                   # (C, WIN) bf16
    _build_slab(win, slab_ref, n_groups=n_groups, taps_per_group=taps_per_group,
                c=c, dilation=dilation, tile_l=tile_l)

    # One fused MXU contraction over all taps*channels, f32 accumulation.
    o_ref[0] = jnp.dot(w_ref[...], slab_ref[...],
                       preferred_element_type=jnp.float32).astype(o_ref.dtype)


def sinc_conv1d_pallas(x_ncl, bigfilter, *, dilation, l_out, tile_l=256,
                       time_splits=1, out_dtype=jnp.float32):
    """Valid-padding, stride-1 conv1d of x (B, C, T) with bigfilter (O, C, K2)."""
    b, c, t_in = x_ncl.shape
    o, c_w, k2 = bigfilter.shape
    assert c_w == c, (c_w, c)
    assert l_out > 0
    assert tile_l % 128 == 0, tile_l
    assert _GROUP_ROWS % c == 0, c

    taps_per_group = _GROUP_ROWS // c
    n_groups = _cdiv(k2, taps_per_group)
    k2_pad = n_groups * taps_per_group          # padded taps -> zero weight cols
    kcols = k2_pad * c

    # Time tiling: (outer "parallel", inner "arbitrary").  The outer split gives
    # v7x's second TensorCore work when batch is small; it is an ordinary serial
    # loop on v5e/v6e.
    n_t = _cdiv(l_out, tile_l)
    n_outer = max(1, min(time_splits, n_t))
    n_inner = _cdiv(n_t, n_outer)
    n_t_pad = n_outer * n_inner
    l_out_pad = n_t_pad * tile_l

    # Input window per output tile, rounded to a lane multiple for clean DMAs.
    win_len = _round_up((tile_l - 1) + (k2_pad - 1) * dilation + 1, 128)

    # Zero-pad time so every tile's window (incl. ragged/padded tiles and the
    # padded taps) is in bounds; padded regions read real zeros, so no garbage
    # reaches the MXU and the zero weight columns contribute exactly nothing.
    t_need = (n_t_pad - 1) * tile_l + win_len
    if t_need > t_in:
        x_ncl = jnp.pad(x_ncl, ((0, 0), (0, 0), (0, t_need - t_in)))

    # Pad out_channels to a full sublane multiple -> unmasked output stores.
    o_pad = _round_up(o, 8)

    # Lane-dense flattened weight: w_flat[o, j*C + ch] = bigfilter[o, ch, j].
    w_flat = jnp.transpose(bigfilter, (0, 2, 1)).reshape(o, k2 * c)
    w_flat = jnp.pad(w_flat, ((0, o_pad - o), (0, (k2_pad - k2) * c)))

    # bf16 MXU inputs: bf16 x bf16 products are exact in the f32 accumulator,
    # but the bf16 rounding of x / weights IS a deviation from the f32 module
    # (the demo reference below is rounded the same way on purpose).
    x_bf = x_ncl.astype(jnp.bfloat16)
    w_bf = w_flat.astype(jnp.bfloat16)

    kernel = functools.partial(
        _sinc_conv1d_kernel, n_groups=n_groups, taps_per_group=taps_per_group,
        c=c, dilation=dilation, tile_l=tile_l, win_len=win_len, n_inner=n_inner)

    out_itemsize = jnp.dtype(out_dtype).itemsize
    cost = pl.CostEstimate(
        flops=2 * b * o_pad * kcols * l_out_pad,
        transcendentals=0,
        bytes_accessed=(b * n_t_pad * c * win_len * 2 + int(w_bf.size) * 2
                        + b * o_pad * l_out_pad * out_itemsize))

    out = pl.pallas_call(
        kernel,
        out_shape=jax.ShapeDtypeStruct((b, o_pad, l_out_pad), out_dtype),
        grid_spec=pltpu.PrefetchScalarGridSpec(
            num_scalar_prefetch=0,
            grid=(b, n_outer, n_inner),
            in_specs=[
                pl.BlockSpec(memory_space=pl.ANY),     # x stays in HBM, manual DMA
                # Resident weight (constant index_map).  TODO(synk): on v7x mark
                # this pipeline_mode=pl.Buffered(1) (or copy once into scratch)
                # to drop the redundant second buffer; left default here since
                # the footprint is small and single-buffering is a v7x-only win.
                pl.BlockSpec((o_pad, kcols), lambda bi, to, ti: (0, 0)),
            ],
            out_specs=pl.BlockSpec(
                (1, o_pad, tile_l),
                lambda bi, to, ti: (bi, 0, to * n_inner + ti)),
            scratch_shapes=[
                pltpu.VMEM((2, c, win_len), jnp.bfloat16),   # double-buffered window
                pltpu.VMEM((kcols, tile_l), jnp.bfloat16),   # im2col slab
                pltpu.SemaphoreType.DMA((2,)),
            ],
        ),
        compiler_params=pltpu.CompilerParams(
            dimension_semantics=("parallel", "parallel", "arbitrary"),
            vmem_limit_bytes=32 * 1024 * 1024,   # fits scoped VMEM on v5e/v6e/v7x
        ),
        cost_estimate=cost,
    )(x_bf, w_bf)

    return out[:, :o, :l_out]


# ----------------------------------------------------------------------------
# Full SincConv forward (same / causal / valid padding, then Pallas conv)
# ----------------------------------------------------------------------------
def sinc_conv_forward(x, params, *, out_channels, in_channels, kernel_size,
                      stride=1, dilation=1, padding="same",
                      padding_mode="reflect", sample_rate=16000,
                      min_low_hz=50, min_band_hz=50, tile_l=256,
                      time_splits=1, out_dtype=jnp.float32):
    low_hz_, band_hz_, offset, window_, n_ = params

    if x.ndim == 2:
        x = x[:, None, :]

    if padding == "same":
        # Faithful to the module: get_padding_elem is called with
        # L_in = self.in_channels (SpeechBrain quirk), not the time length, so
        # "same" padding is generally NOT length-preserving.
        p = get_padding_elem(in_channels, stride, kernel_size, dilation)
        x = jnp.pad(x, ((0, 0), (0, 0), (p[0], p[1])), mode=padding_mode)
    elif padding == "causal":
        num_pad = (kernel_size - 1) * dilation
        x = jnp.pad(x, ((0, 0), (0, 0), (num_pad, 0)))
    elif padding == "valid":
        pass
    else:
        raise ValueError(padding)

    bigfilter = get_sinc_filters(low_hz_, band_hz_, offset, window_, n_,
                                 out_channels, kernel_size, sample_rate,
                                 min_low_hz, min_band_hz)              # (O, 2, 2k)
    k2 = bigfilter.shape[-1]
    t_pad = x.shape[-1]

    # Pallas hot path is stride-1 (plain contiguous lane slices).  stride>1
    # falls back to computing the full-resolution conv and subsampling.
    # TODO(synk): stride>1 should use a polyphase input split in the wrapper so
    # the kernel keeps plain offset reads without the stride-x extra compute.
    l_out_full = t_pad - dilation * (k2 - 1)
    wx = sinc_conv1d_pallas(x.astype(jnp.float32), bigfilter,
                            dilation=dilation, l_out=l_out_full,
                            tile_l=tile_l, time_splits=time_splits,
                            out_dtype=out_dtype)
    if stride > 1:
        l_out = (t_pad - dilation * (k2 - 1) - 1) // stride + 1
        wx = wx[:, :, ::stride][:, :, :l_out]
    return wx, bigfilter, x


if __name__ == "__main__":
    # Small, module-consistent config: the bigfilter always has 2 input channels,
    # out_channels divisible by in_channels, odd kernel_size; time long enough to
    # exercise priming, prefetching, and the split-time grid (2 outer x 4 inner
    # tiles of 256 output samples per batch row).
    batch, in_channels, time = 2, 2, 2048
    out_channels, kernel_size = 8, 9
    stride, dilation = 1, 1
    sample_rate, min_low_hz, min_band_hz = 16000, 50, 50

    params = init_sinc_params(out_channels, in_channels, kernel_size,
                              sample_rate, min_low_hz, min_band_hz)

    key = jax.random.PRNGKey(0)
    x = jax.random.normal(key, (batch, in_channels, time), dtype=jnp.float32)

    wx, bigfilter, x_pad = sinc_conv_forward(
        x, params, out_channels=out_channels, in_channels=in_channels,
        kernel_size=kernel_size, stride=stride, dilation=dilation,
        padding="same", padding_mode="reflect",
        sample_rate=sample_rate, min_low_hz=min_low_hz, min_band_hz=min_band_hz,
        tile_l=256, time_splits=2, out_dtype=jnp.float32)
    wx = jax.block_until_ready(wx)

    # Reference: plain XLA conv on the same bf16-rounded operands the kernel
    # uses, accumulated in f32 (HIGHEST precision), isolating kernel math.
    x_ref = x_pad.astype(jnp.bfloat16).astype(jnp.float32)
    w_ref = bigfilter.astype(jnp.bfloat16).astype(jnp.float32)
    ref = jax.lax.conv_general_dilated(
        x_ref, w_ref, window_strides=(stride,), padding="VALID",
        rhs_dilation=(dilation,), dimension_numbers=("NCH", "OIH", "NCH"),
        precision=jax.lax.Precision.HIGHEST)
    ref = jax.block_until_ready(ref)

    assert wx.shape == ref.shape, (wx.shape, ref.shape)
    assert np.allclose(np.asarray(wx), np.asarray(ref), rtol=1e-3, atol=1e-3)
    print("KERNEL_OK")
</pallas_src>

<mosaic_0001>
module attributes {stable_mosaic.version = 11 : i64} {
  func.func @_sinc_conv1d_kernel(%arg0: i32, %arg1: i32, %arg2: i32, %arg3: memref<2x2x2176xbf16, #tpu.memory_space<any>>, %arg4: memref<8x48xbf16, #tpu.memory_space<vmem>>, %arg5: memref<1x8x256xf32, #tpu.memory_space<vmem>>, %arg6: memref<2x2x384xbf16, #tpu.memory_space<vmem>>, %arg7: memref<48x256xbf16, #tpu.memory_space<vmem>>, %arg8: memref<2x!tpu.dma_semaphore, #tpu.memory_space<semaphore_mem>>) attributes {dimension_semantics = [#tpu.dimension_semantics<parallel>, #tpu.dimension_semantics<parallel>, #tpu.dimension_semantics<arbitrary>], iteration_bounds = array<i64: 2, 2, 4>, scalar_prefetch = 0 : i64, scratch_operands = 3 : i64, tpu.core_type = #tpu.core_type<tc>, window_params = [{}, {pipeline_mode = #tpu.pipeline_mode<synchronous>, transform_indices = @transform_1, window_bounds = array<i64: 8, 48>}, {transform_indices = @transform_2, window_bounds = array<i64: 1, 8, 256>}]} {
    %c2_i32 = arith.constant 2 : i32
    %c0_i32 = arith.constant 0 : i32
    %0 = arith.cmpi eq, %c2_i32, %c0_i32 : i32
    %c1_i32 = arith.constant 1 : i32
    %1 = arith.select %0, %c1_i32, %c2_i32 : i32
    %2 = arith.remsi %arg2, %1 : i32
    %c0_i32_0 = arith.constant 0 : i32
    %3 = arith.cmpi ne, %2, %c0_i32_0 : i32
    %c0_i32_1 = arith.constant 0 : i32
    %4 = arith.cmpi slt, %2, %c0_i32_1 : i32
    %c0_i32_2 = arith.constant 0 : i32
    %5 = arith.cmpi slt, %1, %c0_i32_2 : i32
    %6 = arith.xori %4, %5 : i1
    %7 = arith.andi %6, %3 : i1
    %8 = arith.addi %2, %1 : i32
    %9 = arith.select %7, %8, %2 : i32
    %c0_i32_3 = arith.constant 0 : i32
    %10 = arith.cmpi eq, %arg2, %c0_i32_3 : i32
    %11 = arith.extui %10 : i1 to i32
    %c0_i32_4 = arith.constant 0 : i32
    %12 = arith.cmpi ne, %11, %c0_i32_4 : i32
    scf.if %12 {
      %c4_i32_23 = arith.constant 4 : i32
      %66 = arith.muli %arg1, %c4_i32_23 : i32
      %c0_i32_24 = arith.constant 0 : i32
      %67 = arith.addi %66, %c0_i32_24 : i32
      %c256_i32_25 = arith.constant 256 : i32
      %68 = arith.muli %67, %c256_i32_25 : i32
      %69 = tpu.assume_multiple %68, 128 : i32
      %c0_i32_26 = arith.constant 0 : i32
      %c0_i32_27 = arith.constant 0 : i32
      %c0_i32_28 = arith.constant 0 : i32
      %70 = tpu.memref_slice %arg3[%arg0, %c0_i32_28, %69] : memref<2x2x2176xbf16, #tpu.memory_space<any>> -> memref<1x2x384xbf16, #tpu.memory_space<any>>
      %71 = tpu.memref_squeeze %70 : memref<1x2x384xbf16, #tpu.memory_space<any>> -> memref<2x384xbf16, #tpu.memory_space<any>>
      %c0_i32_29 = arith.constant 0 : i32
      %c0_i32_30 = arith.constant 0 : i32
      %72 = tpu.memref_slice %arg6[%c0_i32_26, %c0_i32_29, %c0_i32_30] : memref<2x2x384xbf16, #tpu.memory_space<vmem>> -> memref<1x2x384xbf16, #tpu.memory_space<vmem>>
      %73 = tpu.memref_squeeze %72 : memref<1x2x384xbf16, #tpu.memory_space<vmem>> -> memref<2x384xbf16, #tpu.memory_space<vmem>>
      %74 = tpu.memref_slice %arg8[%c0_i32_27] : memref<2x!tpu.dma_semaphore, #tpu.memory_space<semaphore_mem>> -> memref<1x!tpu.dma_semaphore, #tpu.memory_space<semaphore_mem>>
      %75 = tpu.memref_squeeze %74 : memref<1x!tpu.dma_semaphore, #tpu.memory_space<semaphore_mem>> -> memref<!tpu.dma_semaphore, #tpu.memory_space<semaphore_mem>>
      tpu.enqueue_dma source(%71 : memref<2x384xbf16, #tpu.memory_space<any>>) target(%73 : memref<2x384xbf16, #tpu.memory_space<vmem>>) target_semaphore(%75 : memref<!tpu.dma_semaphore, #tpu.memory_space<semaphore_mem>>)
    } else {
    }
    %c4_i32 = arith.constant 4 : i32
    %13 = arith.muli %arg1, %c4_i32 : i32
    %14 = arith.addi %13, %arg2 : i32
    %c256_i32 = arith.constant 256 : i32
    %15 = arith.muli %14, %c256_i32 : i32
    %16 = tpu.assume_multiple %15, 128 : i32
    %c0_i32_5 = arith.constant 0 : i32
    %17 = tpu.memref_slice %arg3[%arg0, %c0_i32_5, %16] : memref<2x2x2176xbf16, #tpu.memory_space<any>> -> memref<1x2x384xbf16, #tpu.memory_space<any>>
    %18 = tpu.memref_squeeze %17 : memref<1x2x384xbf16, #tpu.memory_space<any>> -> memref<2x384xbf16, #tpu.memory_space<any>>
    %c0_i32_6 = arith.constant 0 : i32
    %c0_i32_7 = arith.constant 0 : i32
    %19 = tpu.memref_slice %arg6[%9, %c0_i32_6, %c0_i32_7] : memref<2x2x384xbf16, #tpu.memory_space<vmem>> -> memref<1x2x384xbf16, #tpu.memory_space<vmem>>
    %20 = tpu.memref_squeeze %19 : memref<1x2x384xbf16, #tpu.memory_space<vmem>> -> memref<2x384xbf16, #tpu.memory_space<vmem>>
    %21 = tpu.memref_slice %arg8[%9] : memref<2x!tpu.dma_semaphore, #tpu.memory_space<semaphore_mem>> -> memref<1x!tpu.dma_semaphore, #tpu.memory_space<semaphore_mem>>
    %22 = tpu.memref_squeeze %21 : memref<1x!tpu.dma_semaphore, #tpu.memory_space<semaphore_mem>> -> memref<!tpu.dma_semaphore, #tpu.memory_space<semaphore_mem>>
    tpu.wait_dma2 semaphore(%22 : memref<!tpu.dma_semaphore, #tpu.memory_space<semaphore_mem>>) src(%18 : memref<2x384xbf16, #tpu.memory_space<any>>) dst(%20 : memref<2x384xbf16, #tpu.memory_space<vmem>>)
    %c1_i32_8 = arith.constant 1 : i32
    %23 = arith.addi %arg2, %c1_i32_8 : i32
    %c4_i32_9 = arith.constant 4 : i32
    %24 = arith.cmpi slt, %23, %c4_i32_9 : i32
    %25 = arith.extui %24 : i1 to i32
    %c0_i32_10 = arith.constant 0 : i32
    %26 = arith.cmpi ne, %25, %c0_i32_10 : i32
    scf.if %26 {
      %c1_i32_23 = arith.constant 1 : i32
      %66 = arith.addi %arg2, %c1_i32_23 : i32
      %c1_i32_24 = arith.constant 1 : i32
      %67 = arith.subi %c1_i32_24, %9 : i32
      %c4_i32_25 = arith.constant 4 : i32
      %68 = arith.muli %arg1, %c4_i32_25 : i32
      %69 = arith.addi %68, %66 : i32
      %c256_i32_26 = arith.constant 256 : i32
      %70 = arith.muli %69, %c256_i32_26 : i32
      %71 = tpu.assume_multiple %70, 128 : i32
      %c0_i32_27 = arith.constant 0 : i32
      %72 = tpu.memref_slice %arg3[%arg0, %c0_i32_27, %71] : memref<2x2x2176xbf16, #tpu.memory_space<any>> -> memref<1x2x384xbf16, #tpu.memory_space<any>>
      %73 = tpu.memref_squeeze %72 : memref<1x2x384xbf16, #tpu.memory_space<any>> -> memref<2x384xbf16, #tpu.memory_space<any>>
      %c0_i32_28 = arith.constant 0 : i32
      %c0_i32_29 = arith.constant 0 : i32
      %74 = tpu.memref_slice %arg6[%67, %c0_i32_28, %c0_i32_29] : memref<2x2x384xbf16, #tpu.memory_space<vmem>> -> memref<1x2x384xbf16, #tpu.memory_space<vmem>>
      %75 = tpu.memref_squeeze %74 : memref<1x2x384xbf16, #tpu.memory_space<vmem>> -> memref<2x384xbf16, #tpu.memory_space<vmem>>
      %76 = tpu.memref_slice %arg8[%67] : memref<2x!tpu.dma_semaphore, #tpu.memory_space<semaphore_mem>> -> memref<1x!tpu.dma_semaphore, #tpu.memory_space<semaphore_mem>>
      %77 = tpu.memref_squeeze %76 : memref<1x!tpu.dma_semaphore, #tpu.memory_space<semaphore_mem>> -> memref<!tpu.dma_semaphore, #tpu.memory_space<semaphore_mem>>
      tpu.enqueue_dma source(%73 : memref<2x384xbf16, #tpu.memory_space<any>>) target(%75 : memref<2x384xbf16, #tpu.memory_space<vmem>>) target_semaphore(%77 : memref<!tpu.dma_semaphore, #tpu.memory_space<semaphore_mem>>)
    } else {
    }
    %27 = arith.index_cast %9 : i32 to index
    %c0 = arith.constant 0 : index
    %c0_11 = arith.constant 0 : index
    %28 = vector.load %arg6[%27, %c0, %c0_11] : memref<2x2x384xbf16, #tpu.memory_space<vmem>>, vector<1x2x384xbf16>
    %29 = vector.shape_cast %28 : vector<1x2x384xbf16> to vector<2x384xbf16>
    %30 = vector.extract_strided_slice %29 {offsets = [0, 0], sizes = [2, 256], strides = [1, 1]} : vector<2x384xbf16> to vector<2x256xbf16>
    %31 = vector.extract_strided_slice %29 {offsets = [0, 1], sizes = [2, 256], strides = [1, 1]} : vector<2x384xbf16> to vector<2x256xbf16>
    %32 = vector.extract_strided_slice %29 {offsets = [0, 2], sizes = [2, 256], strides = [1, 1]} : vector<2x384xbf16> to vector<2x256xbf16>
    %33 = vector.extract_strided_slice %29 {offsets = [0, 3], sizes = [2, 256], strides = [1, 1]} : vector<2x384xbf16> to vector<2x256xbf16>
    %34 = vector.extract_strided_slice %29 {offsets = [0, 4], sizes = [2, 256], strides = [1, 1]} : vector<2x384xbf16> to vector<2x256xbf16>
    %35 = vector.extract_strided_slice %29 {offsets = [0, 5], sizes = [2, 256], strides = [1, 1]} : vector<2x384xbf16> to vector<2x256xbf16>
    %36 = vector.extract_strided_slice %29 {offsets = [0, 6], sizes = [2, 256], strides = [1, 1]} : vector<2x384xbf16> to vector<2x256xbf16>
    %37 = vector.extract_strided_slice %29 {offsets = [0, 7], sizes = [2, 256], strides = [1, 1]} : vector<2x384xbf16> to vector<2x256xbf16>
    %38 = tpu.concatenate %30, %31, %32, %33, %34, %35, %36, %37 in 0 : vector<2x256xbf16>, vector<2x256xbf16>, vector<2x256xbf16>, vector<2x256xbf16>, vector<2x256xbf16>, vector<2x256xbf16>, vector<2x256xbf16>, vector<2x256xbf16> -> vector<16x256xbf16>
    %c0_12 = arith.constant 0 : index
    %c0_13 = arith.constant 0 : index
    %39 = vector.load %arg7[%c0_12, %c0_13] : memref<48x256xbf16, #tpu.memory_space<vmem>>, vector<16x256xbf16>
    tpu.vector_store %arg7[%c0_12, %c0_13], %38 {strides = array<i32>} : memref<48x256xbf16, #tpu.memory_space<vmem>>, vector<16x256xbf16>,
    %40 = vector.extract_strided_slice %29 {offsets = [0, 8], sizes = [2, 256], strides = [1, 1]} : vector<2x384xbf16> to vector<2x256xbf16>
    %41 = vector.extract_strided_slice %29 {offsets = [0, 9], sizes = [2, 256], strides = [1, 1]} : vector<2x384xbf16> to vector<2x256xbf16>
    %42 = vector.extract_strided_slice %29 {offsets = [0, 10], sizes = [2, 256], strides = [1, 1]} : vector<2x384xbf16> to vector<2x256xbf16>
    %43 = vector.extract_strided_slice %29 {offsets = [0, 11], sizes = [2, 256], strides = [1, 1]} : vector<2x384xbf16> to vector<2x256xbf16>
    %44 = vector.extract_strided_slice %29 {offsets = [0, 12], sizes = [2, 256], strides = [1, 1]} : vector<2x384xbf16> to vector<2x256xbf16>
    %45 = vector.extract_strided_slice %29 {offsets = [0, 13], sizes = [2, 256], strides = [1, 1]} : vector<2x384xbf16> to vector<2x256xbf16>
    %46 = vector.extract_strided_slice %29 {offsets = [0, 14], sizes = [2, 256], strides = [1, 1]} : vector<2x384xbf16> to vector<2x256xbf16>
    %47 = vector.extract_strided_slice %29 {offsets = [0, 15], sizes = [2, 256], strides = [1, 1]} : vector<2x384xbf16> to vector<2x256xbf16>
    %48 = tpu.concatenate %40, %41, %42, %43, %44, %45, %46, %47 in 0 : vector<2x256xbf16>, vector<2x256xbf16>, vector<2x256xbf16>, vector<2x256xbf16>, vector<2x256xbf16>, vector<2x256xbf16>, vector<2x256xbf16>, vector<2x256xbf16> -> vector<16x256xbf16>
    %c16 = arith.constant 16 : index
    %c0_14 = arith.constant 0 : index
    %49 = vector.load %arg7[%c16, %c0_14] : memref<48x256xbf16, #tpu.memory_space<vmem>>, vector<16x256xbf16>
    tpu.vector_store %arg7[%c16, %c0_14], %48 {strides = array<i32>} : memref<48x256xbf16, #tpu.memory_space<vmem>>, vector<16x256xbf16>,
    %50 = vector.extract_strided_slice %29 {offsets = [0, 16], sizes = [2, 256], strides = [1, 1]} : vector<2x384xbf16> to vector<2x256xbf16>
    %51 = vector.extract_strided_slice %29 {offsets = [0, 17], sizes = [2, 256], strides = [1, 1]} : vector<2x384xbf16> to vector<2x256xbf16>
    %52 = vector.extract_strided_slice %29 {offsets = [0, 18], sizes = [2, 256], strides = [1, 1]} : vector<2x384xbf16> to vector<2x256xbf16>
    %53 = vector.extract_strided_slice %29 {offsets = [0, 19], sizes = [2, 256], strides = [1, 1]} : vector<2x384xbf16> to vector<2x256xbf16>
    %54 = vector.extract_strided_slice %29 {offsets = [0, 20], sizes = [2, 256], strides = [1, 1]} : vector<2x384xbf16> to vector<2x256xbf16>
    %55 = vector.extract_strided_slice %29 {offsets = [0, 21], sizes = [2, 256], strides = [1, 1]} : vector<2x384xbf16> to vector<2x256xbf16>
    %56 = vector.extract_strided_slice %29 {offsets = [0, 22], sizes = [2, 256], strides = [1, 1]} : vector<2x384xbf16> to vector<2x256xbf16>
    %57 = vector.extract_strided_slice %29 {offsets = [0, 23], sizes = [2, 256], strides = [1, 1]} : vector<2x384xbf16> to vector<2x256xbf16>
    %58 = tpu.concatenate %50, %51, %52, %53, %54, %55, %56, %57 in 0 : vector<2x256xbf16>, vector<2x256xbf16>, vector<2x256xbf16>, vector<2x256xbf16>, vector<2x256xbf16>, vector<2x256xbf16>, vector<2x256xbf16>, vector<2x256xbf16> -> vector<16x256xbf16>
    %c32 = arith.constant 32 : index
    %c0_15 = arith.constant 0 : index
    %59 = vector.load %arg7[%c32, %c0_15] : memref<48x256xbf16, #tpu.memory_space<vmem>>, vector<16x256xbf16>
    tpu.vector_store %arg7[%c32, %c0_15], %58 {strides = array<i32>} : memref<48x256xbf16, #tpu.memory_space<vmem>>, vector<16x256xbf16>,
    %c0_16 = arith.constant 0 : index
    %c0_17 = arith.constant 0 : index
    %60 = vector.load %arg4[%c0_16, %c0_17] : memref<8x48xbf16, #tpu.memory_space<vmem>>, vector<8x48xbf16>
    %c0_18 = arith.constant 0 : index
    %c0_19 = arith.constant 0 : index
    %61 = vector.load %arg7[%c0_18, %c0_19] : memref<48x256xbf16, #tpu.memory_space<vmem>>, vector<48x256xbf16>
    %cst = arith.constant dense<0.000000e+00> : vector<8x256xf32>
    %62 = tpu.matmul %60, %61, %cst {dimension_numbers = #tpu.dot_dimension_numbers<[1], [0], [0], [1], [0, 0, 1, 1], [], []>} : vector<8x48xbf16>, vector<48x256xbf16>, vector<8x256xf32> -> vector<8x256xf32>
    %c0_20 = arith.constant 0 : index
    %c0_21 = arith.constant 0 : index
    %c0_22 = arith.constant 0 : index
    %63 = vector.load %arg5[%c0_20, %c0_21, %c0_22] : memref<1x8x256xf32, #tpu.memory_space<vmem>>, vector<1x8x256xf32>
    %64 = vector.shape_cast %63 : vector<1x8x256xf32> to vector<8x256xf32>
    %65 = vector.shape_cast %62 : vector<8x256xf32> to vector<1x8x256xf32>
    tpu.vector_store %arg5[%c0_20, %c0_21, %c0_22], %65 {strides = array<i32>} : memref<1x8x256xf32, #tpu.memory_space<vmem>>, vector<1x8x256xf32>,
    return
  }
  func.func @transform_1(%arg0: i32, %arg1: i32, %arg2: i32) -> (i32, i32) {
    %c0_i32 = arith.constant 0 : i32
    %c0_i32_0 = arith.constant 0 : i32
    %c0_i32_1 = arith.constant 0 : i32
    return %c0_i32, %c0_i32_0 : i32, i32
  }
  func.func @transform_2(%arg0: i32, %arg1: i32, %arg2: i32) -> (i32, i32, i32) {
    %c4_i32 = arith.constant 4 : i32
    %0 = arith.muli %arg1, %c4_i32 : i32
    %1 = arith.addi %0, %arg2 : i32
    %c0_i32 = arith.constant 0 : i32
    %c0_i32_0 = arith.constant 0 : i32
    return %arg0, %c0_i32, %1 : i32, i32, i32
  }
}

</mosaic_0001>

<llo_original>
// kernel: tpu_custom_call.1
$region0: #{tpu_custom_call.1}
  #allocation0 [shape = 'u32[]', space=smem, size = 0x4, offset = 0x4, fixed_abs, tag = 'smem constant byte address 0x4 - core index']
  #allocation1 [shape = 'u32[144,128]{1,0:T(1,128)}', space=vmem, size = 0x12000, scoped, tag = 'internal scratch']
  #allocation2 [shape = 'bf16[2,2,384]{2,1,0:T(2,128)(2,1)}', space=vmem, size = 0xc00, scoped, tag = 'scratch operand']
  #allocation3 [shape = 'bf16[48,256]{1,0:T(16,128)(2,1)}', space=vmem, size = 0x6000, scoped, tag = 'scratch operand']
  #allocation4 [shape = 's32[2]{0}', space=sflag, size = 0x8, scoped, tag = 'scratch operand']
  #allocation9 [shape = 's32[]', space=sflag, size = 0x4, offset = 0, fixed_abs, tag = 'sflag constant byte address 0x0 - dummy sync flag']
  #allocation10 [shape = 's32[]', space=sflag, size = 0x4, offset = 0, fixed_abs, tag = 'sflag constant byte address 0x0 - dummy sync flag']
  #allocation11 [shape = 'u32[]', space=smem, size = 0x4, offset = 0x44, fixed_abs, tag = 'smem constant byte address 0x44 - assertion arg 0']
  #allocation12 [shape = 'u32[]', space=smem, size = 0x4, offset = 0x48, fixed_abs, tag = 'smem constant byte address 0x48 - assertion arg 1']
  #allocation13 [shape = 's32[]', space=sflag, size = 0x4, offset = 0, fixed_abs, tag = 'sflag constant byte address 0x0 - dummy sync flag']
  #allocation14 [shape = 's32[]', space=sflag, size = 0x4, offset = 0, fixed_abs, tag = 'sflag constant byte address 0x0 - dummy sync flag']
  %s0 = inlined_call_operand.hbm [shape: bf16[2,2,2176], index: 0, kind: input, shape index: {}]
  %s1 = inlined_call_operand.hbm [shape: bf16[8,48], index: 1, kind: input, shape index: {}]
  %s2 = inlined_call_operand.hbm [shape: f32[2,8,2048], index: 2, kind: output, shape index: {}]
  %s3 = sld [smem:[#allocation0]]
  $region57: #{tpu_custom_call.1} parent=0
    _
  %s5 = ssub.s32 1, %s3
  %s6 = scalar_select 0, %s5, %s3
  $region1: #{tpu_custom_call.1} parent=0
    #allocation5 [shape = 'u8[2048]{0}', space=vmem, size = 0x800, scoped, tag = 'input window, operand 1, single buffered']
    #allocation6 [shape = 's32[2]{0}', space=sflag, size = 0x8, scoped, tag = 'scoped memory for tpu_custom_call.1']
    #allocation7 [shape = 's32[2]{0}', space=sflag, size = 0x8, scoped, tag = 'scoped memory for tpu_custom_call.1']
    #allocation8 [shape = 'u8[16384]{0}', space=vmem, size = 0x4000, scoped, tag = 'output window, operand 0']
    %7 = vsyncpa [#allocation6], 0
    %8 = vsyncpa [#allocation7], 0
    %s9 = scalar_lea.sflag [#allocation7], 1
    %10 = vsyncpa %s9, 0
    loop: start=0, step=1, limit=18
    $region2: #{tpu_custom_call.1} parent=1 // loop_pre_header
      _
    $region3: #{tpu_custom_call.1} parent=1 // loop_header
      %s12 = sphi 0, %s16
      %p13 = scmp.ge.s32.totalorder %s12, 18
      %s19 = sphi 0, %s38
      %s20 = sphi 0, %s34
      %s21 = sphi 0, %s30
      %s22 = sphi 0, %s19
      %s23 = sphi 0, %s20
      %s24 = sphi 0, %s21
      %s25 = sphi 0, %s22
      %s26 = sphi 0, %s23
      %s27 = sphi 0, %s24
      %s39 = sphi 0, %s39
      %s41 = sphi 0, %s39
      %s42 = sphi 0, %s41
      %s56 = sphi 0, %s42
      %s68 = sphi 0, %s70
      %s71 = sphi 0, %s68
      %s72 = sphi 0, %s71
      %s88 = sphi 0, %s72
    $region4: #{tpu_custom_call.1} parent=1 // loop_header_branch
      %15 = sbr.rel (%p13) target = $region8
    $region5: #{tpu_custom_call.1} parent=1 // loop_body
      %s17 = ssub.s32 %s12, 1
      %s18 = ssub.s32 %s12, 2
      %s28 = sadd.s32 1, %s21
      %p29 = scmp.ge.s32.totalorder %s28, 4
      %s30 = scalar_select %p29, 0, %s28
      %s31 = sadd.s32 1, %s20
      %s32 = scalar_select %p29, %s31, %s20
      %p33 = scmp.ge.s32.totalorder %s32, 2
      %s34 = scalar_select %p33, 0, %s32
      %s35 = sadd.s32 1, %s19
      %s36 = scalar_select %p33, %s35, %s19
      %p37 = scmp.ge.s32.totalorder %s36, 2
      %s38 = scalar_select %p37, 0, %s36
      %s40 = sadd.s32 %s39, 1
      %p43 = scmp.eq.s32.totalorder %s12, 15
      %p44 = scmp.ne.s32.totalorder %s39, %s41
      %p45 = scmp.eq.s32.totalorder %s12, 0
      %p46 = por %p44, %p45
      %p47 = scmp.ne.s32.totalorder %s39, %s41
      %p48 = scmp.eq.s32.totalorder %s17, 15
      %p49 = por %p47, %p48
      %p50 = scmp.ne.s32.totalorder %s41, %s42
      %p51 = scmp.eq.s32.totalorder %s17, 0
      %p52 = por %p50, %p51
      %p53 = scmp.ne.s32.totalorder %s41, %s42
      %p54 = scmp.eq.s32.totalorder %s18, 15
      %p55 = por %p53, %p54
      %p57 = scmp.ne.s32.totalorder %s42, %s56
      %p58 = scmp.eq.s32.totalorder %s18, 0
      %p59 = por %p57, %p58
      %s60 = smul.u32 %s20, 4
      %s61 = sadd.s32 %s60, %s21
      %s62 = smul.u32 %s34, 4
      %s63 = sadd.s32 %s62, %s30
      %s64 = ssub.s32 %s19, %s38
      %s65 = ssub.s32 %s61, %s63
      %s66 = sor.u32 %s64, %s65
      %p67 = scmp.eq.s32.totalorder %s66, 0
      %s69 = sadd.s32 %s68, 1
      %s70 = scalar_select %p67, %s68, %s69
      %p73 = pneg %p67
      %p74 = scmp.eq.s32.totalorder %s12, 15
      %p75 = por %p73, %p74
      %p76 = scmp.ne.s32.totalorder %s68, %s71
      %p77 = scmp.eq.s32.totalorder %s12, 0
      %p78 = por %p76, %p77
      %p79 = scmp.ne.s32.totalorder %s68, %s71
      %p80 = scmp.eq.s32.totalorder %s17, 15
      %p81 = por %p79, %p80
      %p82 = scmp.ne.s32.totalorder %s71, %s72
      %p83 = scmp.eq.s32.totalorder %s17, 0
      %p84 = por %p82, %p83
      %p85 = scmp.ne.s32.totalorder %s71, %s72
      %p86 = scmp.eq.s32.totalorder %s18, 15
      %p87 = por %p85, %p86
      %p89 = scmp.ne.s32.totalorder %s72, %s88
      %p90 = scmp.eq.s32.totalorder %s18, 0
      %p91 = por %p89, %p90
      %p92 = scmp.le.s32.totalorder 1, %s12
      %p93 = scmp.lt.s32.totalorder %s12, 17
      %p94 = pnand %p92, %p93
      %p95 = pneg %p94
      // Predicated region
      $region9: #{tpu_custom_call.1} parent=5 // pred_check
        _
      $region10: #{tpu_custom_call.1} parent=5 // pred_check_branch
        %97 = sbr.rel (%p94) target = $region12
      $region11: #{tpu_custom_call.1} parent=5 // pred_region
        %s98 = ssub.s32 %s12, 1
        // Predicated region
        $region13: #{tpu_custom_call.1} parent=11 // pred_check
          %p99 = pneg %p52
        $region14: #{tpu_custom_call.1} parent=11 // pred_check_branch
          %101 = sbr.rel (%p99) target = $region16
        $region15: #{tpu_custom_call.1} parent=11 // pred_region
          %s103 = ssub.s32 64, 64
          %104 = vsyncadd [#allocation6], %s103
          %s106 = sshll.u32 [#allocation5], 4
          %s107 = int_to_ptr.vmem [resolvable:$true] %s106
          %109 = dma.hbm_to_vmem [thread:$0]  %s1, 64, %s107, [#allocation6]
        $region16: #{tpu_custom_call.1} parent=11 // pred_fallthru
          _
      $region12: #{tpu_custom_call.1} parent=5 // pred_fallthru
        _
      %p110 = scmp.lt.s32.totalorder %s12, 16
      // Predicated region
      $region17: #{tpu_custom_call.1} parent=5 // pred_check
        %p111 = pneg %p110
      $region18: #{tpu_custom_call.1} parent=5 // pred_check_branch
        %113 = sbr.rel (%p111) target = $region20
      $region19: #{tpu_custom_call.1} parent=5 // pred_region
        _
      $region20: #{tpu_custom_call.1} parent=5 // pred_fallthru
        _
      %p114 = scmp.le.s32.totalorder 1, %s12
      %p115 = scmp.lt.s32.totalorder %s12, 17
      %p116 = pnand %p114, %p115
      %p117 = pneg %p116
      // Predicated region
      $region21: #{tpu_custom_call.1} parent=5 // pred_check
        _
      $region22: #{tpu_custom_call.1} parent=5 // pred_check_branch
        %119 = sbr.rel (%p116) target = $region24
      $region23: #{tpu_custom_call.1} parent=5 // pred_region
        %s120 = ssub.s32 %s12, 1
        // Predicated region
        $region25: #{tpu_custom_call.1} parent=23 // pred_check
          %p121 = pneg %p52
        $region26: #{tpu_custom_call.1} parent=23 // pred_check_branch
          %123 = sbr.rel (%p121) target = $region28
        $region27: #{tpu_custom_call.1} parent=23 // pred_region
          %124 = dma.done [#allocation6], 64
        $region28: #{tpu_custom_call.1} parent=23 // pred_fallthru
          _
        %p125 = pneg %p52
        %p126 = pneg %p49
        %p127 = pneg %p84
        %p128 = pneg %p81
        %s129 = sand.u32 %s71, 1
        %s130 = scalar_lea.sflag [#allocation7], %s129
        %s131 = sand.u32 %s71, 1
        %s132 = smul.addr %s131, 16
        %s133 = scalar_lea.vmem [#allocation8], %s132
        %s134 = smul.u32 %s23, 4
        %s135 = sadd.s32 %s134, %s24
        %s136 = smul.u32 2, %s135
        %p138 = scmp.lt.s32.totalorder %s24, 0
        %s139 = ssub.s32 0, %s24
        %s140 = scalar_select %p138, %s139, %s24
        %s141 = sand.u32 %s140, 1
        %s142 = ssub.s32 0, %s141
        %s143 = scalar_select %p138, %s142, %s141
        %p144 = scmp.ne.s32.totalorder %s143, 0
        %p145 = scmp.lt.s32.totalorder %s143, 0
        %p146 = pnand %p145, %p144
        %p147 = pneg %p146
        %s148 = sadd.s32 %s143, 2
        %s149 = scalar_select %p147, %s148, %s143
        %p150 = scmp.eq.s32.totalorder %s24, 0
        // Predicated region
        $region29: #{tpu_custom_call.1} parent=23 // pred_check
          %p151 = pneg %p150
        $region30: #{tpu_custom_call.1} parent=23 // pred_check_branch
          %153 = sbr.rel (%p151) target = $region32
        $region31: #{tpu_custom_call.1} parent=23 // pred_region
          %s154 = smul.u32 %s23, 1024
          %s155 = sshra.s32 %s154, 7
          %s156 = sand.u32 %s154, 127
          %s157 = smul.u32 %s22, 17
          %s158 = sadd.s32 %s155, %s157
          %s159 = smul.addr %s158, 16
          %s160 = scalar_lea.hbm %s0, %s159
          // Predicated region
          $region33: #{tpu_custom_call.1} parent=31 // pred_check
            _
          $region34: #{tpu_custom_call.1} parent=31 // pred_check_branch
            %162 = sbr.rel target = $region36
          $region35: #{tpu_custom_call.1} parent=31 // pred_region
            %163 = sst [smem:[#allocation11]] [#allocation10]
            %164 = sst [smem:[#allocation12]] [#allocation9]
          $region36: #{tpu_custom_call.1} parent=31 // pred_fallthru
            _
          %166 = shalt.err (0)
          %s168 = sshll.u32 [#allocation2], 4
          %s169 = int_to_ptr.vmem [resolvable:$true] %s168
          %171 = dma.hbm_to_vmem [thread:$0]  %s160, 48, %s169, [#allocation4]
        $region32: #{tpu_custom_call.1} parent=23 // pred_fallthru
          _
        %s172 = smul.u32 %s23, 4
        %s173 = sadd.s32 %s172, %s24
        %s174 = smul.u32 %s173, 256
        %s175 = smul.u32 %s149, 3
        %s176 = scalar_lea.vmem [#allocation2], %s175
        %s177 = scalar_lea.sflag [#allocation4], %s149
        %s178 = smul.u32 1, 3
        %s179 = sshll.u32 %s178, 4
        %180 = dma.done %s177, %s179
        %s181 = sadd.s32 %s24, 1
        %p182 = scmp.lt.s32.totalorder %s181, 4
        // Predicated region
        $region37: #{tpu_custom_call.1} parent=23 // pred_check
          %p183 = pneg %p182
        $region38: #{tpu_custom_call.1} parent=23 // pred_check_branch
          %185 = sbr.rel (%p183) target = $region40
        $region39: #{tpu_custom_call.1} parent=23 // pred_region
          %s186 = ssub.s32 1, %s149
          %s187 = sadd.s32 %s172, %s181
          %s188 = smul.u32 %s187, 256
          %s189 = sshra.s32 %s188, 7
          %s190 = sand.u32 %s188, 127
          %s191 = smul.u32 %s22, 17
          %s192 = sadd.s32 %s189, %s191
          %s193 = smul.addr %s192, 16
          %s194 = scalar_lea.hbm %s0, %s193
          %s195 = smul.u32 %s186, 3
          %s196 = scalar_lea.vmem [#allocation2], %s195
          %s197 = scalar_lea.sflag [#allocation4], %s186
          // Predicated region
          $region41: #{tpu_custom_call.1} parent=39 // pred_check
            _
          $region42: #{tpu_custom_call.1} parent=39 // pred_check_branch
            %199 = sbr.rel target = $region44
          $region43: #{tpu_custom_call.1} parent=39 // pred_region
            %200 = sst [smem:[#allocation11]] [#allocation14]
            %201 = sst [smem:[#allocation12]] [#allocation13]
          $region44: #{tpu_custom_call.1} parent=39 // pred_fallthru
            _
          %203 = shalt.err (0)
          %s205 = sshll.u32 %s196, 4
          %s206 = int_to_ptr.vmem [resolvable:$true] %s205
          %208 = dma.hbm_to_vmem [thread:$0]  %s194, 48, %s206, %s197
        $region40: #{tpu_custom_call.1} parent=23 // pred_fallthru
          _
        %v209 = vld [vmem:[%s176] sm:$0x7]
        %v212 = vunpack.c.l.s4 1966171168
        %v213 = vunpack.c.0.s8 %v212
        %v214 = vlaneseq
        %v215 = vshrl.u32 %v214, 7
        %v216 = vsub.s32 %v213, %v215
        %v217 = vrot.slane %v209, %v216
        %v218 = vcombine.high %v217, %v217
        %v220 = vunpack.c.l.s4 1966171168
        %v221 = vunpack.c.0.s8 %v220
        %v222 = vlaneseq
        %v223 = vshrl.u32 %v222, 7
        %v224 = vsub.s32 %v221, %v223
        %v225 = vrot.slane %v217, %v224
        %v227 = vunpack.c.l.s4 1966171168
        %v228 = vunpack.c.0.s8 %v227
        %v229 = vlaneseq
        %v230 = vshrl.u32 %v229, 7
        %v231 = vsub.s32 %v228, %v230
        %v232 = vrot.slane %v218, %v231
        %v233 = vcombine.low %v209, %v209
        %v235 = vunpack.c.l.s4 1966171168
        %v236 = vunpack.c.0.s8 %v235
        %v237 = vlaneseq
        %v238 = vshrl.u32 %v237, 7
        %v239 = vsub.s32 %v236, %v238
        %v240 = vrot.slane %v233, %v239
        %v241 = vcombine.high %v240, %v240
        %v243 = vunpack.c.l.s4 1966171168
        %v244 = vunpack.c.0.s8 %v243
        %v245 = vlaneseq
        %v246 = vshrl.u32 %v245, 7
        %v247 = vsub.s32 %v244, %v246
        %v248 = vrot.slane %v240, %v247
        %v250 = vunpack.c.l.s4 1966171168
        %v251 = vunpack.c.0.s8 %v250
        %v252 = vlaneseq
        %v253 = vshrl.u32 %v252, 7
        %v254 = vsub.s32 %v251, %v253
        %v255 = vrot.slane %v241, %v254
        %v256 = vcombine.high %v248, %v248
        %257 = vrot.lane.b32.xlu0 %v248, 127
        %v258 = vpop.permute.xlu0 %257
        %259 = vrot.lane.b32.xlu0 %v255, 127
        %v260 = vpop.permute.xlu0 %259
        %261 = vrot.lane.b32.xlu0 %v256, 127
        %v262 = vpop.permute.xlu0 %261
        %vm263 = vcmask 1039360
        %v264 = vsel %vm263, %v258, %v260
        %v265 = vsel %vm263, %v260, %v262
        %v266 = vcombine.low %v217, %v217
        %v268 = vunpack.c.l.s4 1966171168
        %v269 = vunpack.c.0.s8 %v268
        %v270 = vlaneseq
        %v271 = vshrl.u32 %v270, 7
        %v272 = vsub.s32 %v269, %v271
        %v273 = vrot.slane %v266, %v272
        %v274 = vcombine.high %v273, %v273
        %275 = vrot.lane.b32.xlu0 %v273, 126
        %v276 = vpop.permute.xlu0 %275
        %277 = vrot.lane.b32.xlu0 %v225, 126
        %v278 = vpop.permute.xlu0 %277
        %279 = vrot.lane.b32.xlu0 %v274, 126
        %v280 = vpop.permute.xlu0 %279
        %vm281 = vcmask 1031168
        %v282 = vsel %vm281, %v276, %v278
        %v283 = vsel %vm281, %v278, %v280
        %v284 = vcombine.low %v240, %v240
        %v286 = vunpack.c.l.s4 1966171168
        %v287 = vunpack.c.0.s8 %v286
        %v288 = vlaneseq
        %v289 = vshrl.u32 %v288, 7
        %v290 = vsub.s32 %v287, %v289
        %v291 = vrot.slane %v284, %v290
        %v292 = vcombine.high %v291, %v291
        %293 = vrot.lane.b32.xlu0 %v291, 125
        %v294 = vpop.permute.xlu0 %293
        %295 = vrot.lane.b32.xlu0 %v248, 125
        %v296 = vpop.permute.xlu0 %295
        %297 = vrot.lane.b32.xlu0 %v292, 125
        %v298 = vpop.permute.xlu0 %297
        %vm299 = vcmask 1022976
        %v300 = vsel %vm299, %v294, %v296
        %v301 = vsel %vm299, %v296, %v298
        %v302 = vcombine.low %v225, %v225
        %v303 = vcombine.low %v232, %v232
        %304 = vrot.lane.b32.xlu0 %v302, 124
        %v305 = vpop.permute.xlu0 %304
        %306 = vrot.lane.b32.xlu0 %v303, 124
        %v307 = vpop.permute.xlu0 %306
        %308 = vrot.lane.b32.xlu0 %v225, 124
        %v309 = vpop.permute.xlu0 %308
        %vm310 = vcmask 1014784
        %v311 = vsel %vm310, %v305, %v307
        %v312 = vsel %vm310, %v307, %v309
        %v313 = vcombine.low %v248, %v248
        %v314 = vcombine.low %v255, %v255
        %315 = vrot.lane.b32.xlu0 %v313, 123
        %v316 = vpop.permute.xlu0 %315
        %317 = vrot.lane.b32.xlu0 %v314, 123
        %v318 = vpop.permute.xlu0 %317
        %319 = vrot.lane.b32.xlu0 %v248, 123
        %v320 = vpop.permute.xlu0 %319
        %vm321 = vcmask 1006592
        %v322 = vsel %vm321, %v316, %v318
        %v323 = vsel %vm321, %v318, %v320
        %v324 = vcombine.low %v273, %v273
        %325 = vrot.lane.b32.xlu0 %v324, 122
        %v326 = vpop.permute.xlu0 %325
        %327 = vrot.lane.b32.xlu0 %v302, 122
        %v328 = vpop.permute.xlu0 %327
        %329 = vrot.lane.b32.xlu0 %v273, 122
        %v330 = vpop.permute.xlu0 %329
        %vm331 = vcmask 998400
        %v332 = vsel %vm331, %v326, %v328
        %v333 = vsel %vm331, %v328, %v330
        %v334 = vcombine.low %v291, %v291
        %335 = vrot.lane.b32.xlu0 %v334, 121
        %v336 = vpop.permute.xlu0 %335
        %337 = vrot.lane.b32.xlu0 %v313, 121
        %v338 = vpop.permute.xlu0 %337
        %339 = vrot.lane.b32.xlu0 %v291, 121
        %v340 = vpop.permute.xlu0 %339
        %vm341 = vcmask 990208
        %v342 = vsel %vm341, %v336, %v338
        %v343 = vsel %vm341, %v338, %v340
        %vm344 = vcmask 1040384
        %v347 = vsel %vm344, %v225, %v264
        %v350 = vsel %vm344, %v232, %v265
        %vm351 = vcmask 1041408
        %v353 = vsel %vm351, %v347, %v282
        %v355 = vsel %vm351, %v350, %v283
        %vm356 = vcmask 1042432
        %v358 = vsel %vm356, %v353, %v300
        %v360 = vsel %vm356, %v355, %v301
        %vm361 = vcmask 1043456
        %v363 = vsel %vm361, %v358, %v311
        %v365 = vsel %vm361, %v360, %v312
        %vm366 = vcmask 1044480
        %v368 = vsel %vm366, %v363, %v322
        %v370 = vsel %vm366, %v365, %v323
        %vm371 = vcmask 1045504
        %v373 = vsel %vm371, %v368, %v332
        %v375 = vsel %vm371, %v370, %v333
        %vm376 = vcmask 1046528
        %v378 = vsel %vm376, %v373, %v342
        %v381 = vsel %vm376, %v375, %v343
        %383 = vst [vmem:[#allocation3] sm:$0xff] %v378
        %384 = vst [vmem:[#allocation3 + $0x8] sm:$0xff] %v381
        %v385 = vcombine.high %v225, %v225
        %v388 = vsel %vm344, %v385, %v262
        %v390 = vsel %vm351, %v388, %v280
        %v392 = vsel %vm356, %v390, %v298
        %v394 = vsel %vm361, %v392, %v309
        %v396 = vsel %vm366, %v394, %v320
        %v398 = vsel %vm371, %v396, %v330
        %v400 = vsel %vm376, %v398, %v340
        %404 = vrot.lane.b32.xlu0 %v378, 120
        %v405 = vpop.permute.xlu0 %404
        %406 = vrot.lane.b32.xlu0 %v381, 120
        %v407 = vpop.permute.xlu0 %406
        %408 = vrot.lane.b32.xlu0 %v400, 120
        %v409 = vpop.permute.xlu0 %408
        %vm410 = vcmask 982016
        %v411 = vsel %vm410, %v405, %v407
        %v412 = vsel %vm410, %v407, %v409
        %415 = vst [vmem:[#allocation3 + $0x10] sm:$0xff] %v411
        %416 = vst [vmem:[#allocation3 + $0x18] sm:$0xff] %v412
        %417 = vrot.lane.b32.xlu0 %v378, 112
        %v418 = vpop.permute.xlu0 %417
        %419 = vrot.lane.b32.xlu0 %v381, 112
        %v420 = vpop.permute.xlu0 %419
        %421 = vrot.lane.b32.xlu0 %v400, 112
        %v422 = vpop.permute.xlu0 %421
        %vm423 = vcmask 916480
        %v424 = vsel %vm423, %v418, %v420
        %v425 = vsel %vm423, %v420, %v422
        %428 = vst [vmem:[#allocation3 + $0x20] sm:$0xff] %v424
        %429 = vst [vmem:[#allocation3 + $0x28] sm:$0xff] %v425
        %v430 = vld [vmem:[#allocation5] sm:$0xf]
        %v431 = vld [vmem:[#allocation3] sm:$0xff]
        %v432 = vld [vmem:[#allocation3 + $0x8] sm:$0xff]
        %v433 = vld [vmem:[#allocation3 + $0x10] sm:$0xff]
        %v434 = vld [vmem:[#allocation3 + $0x18] sm:$0xff]
        %v435 = vld [vmem:[#allocation3 + $0x20] sm:$0xff]
        %v436 = vld [vmem:[#allocation3 + $0x28] sm:$0xff]
        %vm437 = vcmask 392192
        %v439 = vsel %vm437, %v430, 0
        %441 = vmatprep.subr.bf16.mxu0 %v432
        %442 = vmatpush1.bf16.msra.mxu0 %v431
        %443 = vmatprep.subr.bf16.mxu0 %v434
        %444 = vmatpush1.bf16.msra.mxu0 %v433
        %445 = vmatprep.subr.bf16.mxu0 %v436
        %446 = vmatpush1.bf16.msra.mxu0 %v435
        %447 = vmatprep.subr.bf16.mxu0 0
        %448 = vmatpush1.bf16.msra.mxu0 0
        %449 = vmatprep.subr.bf16.mxu0 0
        %450 = vmatpush1.bf16.msra.mxu0 0
        %451 = vmatprep.subr.bf16.mxu0 0
        %452 = vmatpush1.bf16.msra.mxu0 0
        %453 = vmatprep.subr.bf16.mxu0 0
        %454 = vmatpush1.bf16.msra.mxu0 0
        %455 = vmatprep.subr.bf16.mxu0 0
        %456 = vmatpush1.bf16.msra.mxu0 0
        %457 = vmatprep.subr.bf16.mxu0 0
        %458 = vmatpush1.bf16.msra.mxu0 0
        %459 = vmatprep.subr.bf16.mxu0 0
        %460 = vmatpush1.bf16.msra.mxu0 0
        %461 = vmatprep.subr.bf16.mxu0 0
        %462 = vmatpush1.bf16.msra.mxu0 0
        %463 = vmatprep.subr.bf16.mxu0 0
        %464 = vmatpush1.bf16.msra.mxu0 0
        %465 = vmatprep.subr.bf16.mxu0 0
        %466 = vmatpush1.bf16.msra.mxu0 0
        %467 = vmatprep.subr.bf16.mxu0 0
        %468 = vmatpush1.bf16.msra.mxu0 0
        %469 = vmatprep.subr.bf16.mxu0 0
        %470 = vmatpush1.bf16.msra.mxu0 0
        %471 = vmatprep.subr.bf16.mxu0 0
        %472 = vmatpush1.bf16.msra.mxu0 0
        %473 = vmatprep.mubr.bf16.mxu0 0
        %474 = vmatmul.mubr.bf16.gmra.mrb[0].mxu0 %v439
        %v475 = vpop.f32.mrb[0].mxu0
        %v476 = vadd.f32 0.0, %v475
        %v477 = vpop.f32.mrb[0].mxu0
        %v478 = vadd.f32 0.0, %v477
        %v479 = vpop.f32.mrb[0].mxu0
        %v480 = vpop.f32.mrb[0].mxu0
        %481 = vdwg.mxu0
        %482 = vst [vmem:[%s133] sm:$0xff] %v476
        %483 = vst [vmem:[%s133 + $0x8] sm:$0xff] %v478
        %s484 = sand.u32 %s71, 1
        %s485 = scalar_lea.sflag [#allocation7], %s484
        %s486 = sand.u32 %s71, 1
        %s487 = smul.addr %s486, 16
        %s488 = scalar_lea.vmem [#allocation8], %s487
        // Predicated region
        $region45: #{tpu_custom_call.1} parent=23 // pred_check
          %p489 = pneg %p81
        $region46: #{tpu_custom_call.1} parent=23 // pred_check_branch
          %491 = sbr.rel (%p489) target = $region48
        $region47: #{tpu_custom_call.1} parent=23 // pred_region
          %s492 = smul.u32 %s23, 4
          %s493 = sadd.s32 %s492, %s24
          %s494 = smul.u32 2, %s493
          %s496 = ssub.s32 256, 256
          %497 = vsyncadd %s485, %s496
          %s498 = smul.addr %s22, 16
          %s499 = sadd.s32 %s494, %s498
          %s500 = smul.addr %s499, 128
          %s501 = scalar_lea.hbm %s2, %s500
          %s503 = sshll.u32 %s488, 4
          %s504 = int_to_ptr.vmem [resolvable:$true] %s503
          %506 = dma.vmem_to_hbm [thread:$0]  %s504, 256, %s501, %s485
        $region48: #{tpu_custom_call.1} parent=23 // pred_fallthru
          _
      $region24: #{tpu_custom_call.1} parent=5 // pred_fallthru
        _
      %p507 = scmp.le.s32.totalorder 2, %s12
      // Predicated region
      $region49: #{tpu_custom_call.1} parent=5 // pred_check
        %p508 = pneg %p507
      $region50: #{tpu_custom_call.1} parent=5 // pred_check_branch
        %510 = sbr.rel (%p508) target = $region52
      $region51: #{tpu_custom_call.1} parent=5 // pred_region
        %s511 = ssub.s32 %s12, 2
        // Predicated region
        $region53: #{tpu_custom_call.1} parent=51 // pred_check
          %p512 = pneg %p87
        $region54: #{tpu_custom_call.1} parent=51 // pred_check_branch
          %514 = sbr.rel (%p512) target = $region56
        $region55: #{tpu_custom_call.1} parent=51 // pred_region
          %s515 = sand.u32 %s72, 1
          %s516 = scalar_lea.sflag [#allocation7], %s515
          %s517 = sand.u32 %s72, 1
          %s518 = smul.addr %s517, 16
          %s519 = scalar_lea.vmem [#allocation8], %s518
          %520 = dma.done %s516, 256
        $region56: #{tpu_custom_call.1} parent=51 // pred_fallthru
          _
      $region52: #{tpu_custom_call.1} parent=5 // pred_fallthru
        _
    $region6: #{tpu_custom_call.1} parent=1 // loop_footer
      %s16 = sadd.s32 1, %s12
    $region7: #{tpu_custom_call.1} parent=1 // loop_footer_branch
      %11 = sbr.rel target = $region3
    $region8: #{tpu_custom_call.1} parent=1 // loop_exit
      _
    %521 = vsyncpa [#allocation6], 1
    %s522 = scalar_lea.sflag [#allocation6], 1
    %523 = vsyncpa %s522, 1
    %524 = vsyncpa [#allocation7], 1
    %s525 = scalar_lea.sflag [#allocation7], 1
    %526 = vsyncpa %s525, 1
  %527 = vsyncmov [#allocation4]
  %s528 = vpop.sfrf %527
  %p529 = scmp.eq.s32.totalorder %s528, 0
  %p530 = pneg %p529
  %532 = shalt.err (%p530)
  %s533 = scalar_lea.sflag [#allocation4], 1
  %534 = vsyncmov %s533
  %s535 = vpop.sfrf %534
  %p536 = scmp.eq.s32.totalorder %s535, 0
  %p537 = pneg %p536
  %539 = shalt.err (%p537)

</llo_original>
